<compile_context>
chip_gen: v6e
topology: v6e:2x2x1
jax: 0.10.0
libtpu: 0.0.40
codegen_flags: <defaults>
</compile_context>

<pallas_src>
from functools import lru_cache

import numpy as np
import jax
import jax.numpy as jnp
from jax.experimental import pallas as pl
from jax.experimental.pallas import tpu as pltpu

LOW_BOUND = 40
HIGH_BOUND = 150
NUM_BINS = HIGH_BOUND - LOW_BOUND   # 110
PAD_F = 128                         # lane-padded bin count
FPS = 30.0
PI = 3.14159265                     # matches the module's constant for two_pi_n

ROW_BLOCK = 128                     # row tile when B is large (v7x dual-TC grid)


def sp_loss_kernel(wave_ref, basis_ref, gt_ref, loss_ref, idx_ref):
    # One fused bf16 MXU pass, f32 accumulation: (TB, T) x (T, 256) -> (TB, 256)
    proj = jnp.dot(wave_ref[...], basis_ref[...],
                   preferred_element_type=jnp.float32)
    s = proj[:, :PAD_F]              # windowed-sin projection (pads -> 0)
    c = proj[:, PAD_F:]              # windowed-cos projection (pads -> 0)
    ca = s * s + c * c               # complex_absolute, (TB, 128)
    rows = ca.shape[0]

    col = jax.lax.broadcasted_iota(jnp.int32, (rows, PAD_F), 1)
    valid = col < NUM_BINS
    ca_m = jnp.where(valid, ca, jnp.float32(-jnp.inf))   # mask the 18 pad lanes

    # Fused gt clamp -> class target (3 cheap VPU ops; was wrapper-side glue).
    g = gt_ref[...]                                        # (TB, 1) f32
    hr = jnp.where(g >= HIGH_BOUND, jnp.float32(HIGH_BOUND - 1), g)
    hr = jnp.where(hr <= LOW_BOUND, jnp.float32(LOW_BOUND), hr)
    tgt = (hr - LOW_BOUND).astype(jnp.int32)               # (TB, 1)

    # argmax over frequency bins (first occurrence, like torch.max); real bins
    # are >= 0 so pad (-inf) columns can never match max_val.
    max_val = jnp.max(ca_m, axis=1, keepdims=True)          # (TB, 1)
    idx = jnp.min(jnp.where(ca_m == max_val, col, jnp.int32(PAD_F)),
                  axis=1, keepdims=True)
    idx_ref[...] = idx + LOW_BOUND

    # Per-row CrossEntropy: loss_b = logsumexp(ca[b]) - ca[b, target[b]].
    # exp(-inf - max) = 0, so pad lanes add no softmax mass.  Mean over the
    # batch is done in the JAX wrapper (keeps the kernel row-parallel).
    lse = max_val + jnp.log(jnp.sum(jnp.exp(ca_m - max_val),
                                    axis=1, keepdims=True))
    tgt_logit = jnp.sum(jnp.where(col == tgt, ca, 0.0),
                        axis=1, keepdims=True)
    loss_ref[...] = lse - tgt_logit                          # (TB, 1)


@lru_cache(maxsize=None)
def _build_basis(clip_length):
    """(T, 256) bf16 constant: [hann*sin | pad | hann*cos | pad]. Built once."""
    T = clip_length
    n = np.arange(T, dtype=np.float32)
    hann = np.hanning(T).astype(np.float32)
    two_pi_n = (2.0 * PI * n).astype(np.float32)
    f_t = (np.arange(LOW_BOUND, HIGH_BOUND, dtype=np.float32) / 60.0) / FPS
    ang = np.outer(two_pi_n, f_t).astype(np.float32)         # (T, F)
    basis = np.zeros((T, 2 * PAD_F), dtype=np.float32)
    basis[:, :NUM_BINS] = np.sin(ang) * hann[:, None]
    basis[:, PAD_F:PAD_F + NUM_BINS] = np.cos(ang) * hann[:, None]
    # bf16: single-pass MXU matmul and half the basis VMEM/DMA bytes.
    return jnp.asarray(basis).astype(jnp.bfloat16)


@jax.jit
def _sp_loss_call(wave, gt, basis):
    B, T = wave.shape
    wave_bf16 = wave.astype(jnp.bfloat16)          # bf16 MXU inputs (review #1)
    gt_f = gt.astype(jnp.float32).reshape(B, 1)    # clamp happens in-kernel

    out_shape = (jax.ShapeDtypeStruct((B, 1), jnp.float32),
                 jax.ShapeDtypeStruct((B, 1), jnp.int32))
    cost = pl.CostEstimate(
        flops=2 * B * T * (2 * PAD_F) + 12 * B * PAD_F,
        transcendentals=B * PAD_F,
        bytes_accessed=B * T * 2 + T * (2 * PAD_F) * 2 + B * 4 + B * 8,
    )

    if B >= ROW_BLOCK:
        # Row-parallel 1-D grid: on v7x the 'parallel' axis is sharded across
        # both TensorCores; basis index_map is constant so it is DMA'd once and
        # stays VMEM-resident.  Block sizes stay tiny vs v7x's 32 MiB scoped VMEM.
        loss_rows, idx = pl.pallas_call(
            sp_loss_kernel,
            out_shape=out_shape,
            grid=(pl.cdiv(B, ROW_BLOCK),),
            in_specs=[pl.BlockSpec((ROW_BLOCK, T), lambda i: (i, 0)),
                      pl.BlockSpec((T, 2 * PAD_F), lambda i: (0, 0)),
                      pl.BlockSpec((ROW_BLOCK, 1), lambda i: (i, 0))],
            out_specs=(pl.BlockSpec((ROW_BLOCK, 1), lambda i: (i, 0)),
                       pl.BlockSpec((ROW_BLOCK, 1), lambda i: (i, 0))),
            compiler_params=pltpu.CompilerParams(
                dimension_semantics=("parallel",)),
            cost_estimate=cost,
        )(wave_bf16, basis, gt_f)
    else:
        # Small batch: grid-less single invocation, everything VMEM-resident.
        vmem = pl.BlockSpec(memory_space=pltpu.MemorySpace.VMEM)
        loss_rows, idx = pl.pallas_call(
            sp_loss_kernel,
            out_shape=out_shape,
            in_specs=[vmem, vmem, vmem],
            out_specs=(vmem, vmem),
            cost_estimate=cost,
        )(wave_bf16, basis, gt_f)

    # Mean reduction in the wrapper (fuses into surrounding XLA for free).
    return jnp.mean(loss_rows[:, 0]), idx[:, 0]


def sp_loss(wave, gt, clip_length):
    """Returns (loss, whole_max_idx) matching SP_loss.forward with loss_type=1.

    NOTE: if the training loop evaluates many clips, batch them into one call
    (B >= 128) rather than many tiny calls — the MXU M-dim and the launch cost
    are both amortized that way.
    """
    B, T = wave.shape
    assert T == clip_length
    basis = _build_basis(clip_length)              # cached device constant
    return _sp_loss_call(wave, gt, basis)


def _reference(wave, gt, clip_length, quantize_bf16):
    """Pure-JAX reference.

    quantize_bf16=False : mirrors the PyTorch forward in full f32.
    quantize_bf16=True  : uses the same bf16 basis / bf16 wave quantization as
                          the kernel (same MXU path) — exact-math check.
    """
    B, T = wave.shape
    if quantize_bf16:
        basis = _build_basis(clip_length)
        proj = jnp.dot(wave.astype(jnp.bfloat16), basis,
                       preferred_element_type=jnp.float32)
        ca = (proj[:, :NUM_BINS] ** 2
              + proj[:, PAD_F:PAD_F + NUM_BINS] ** 2)
    else:
        n = jnp.arange(T, dtype=jnp.float32)
        hanning = jnp.asarray(np.hanning(T), dtype=jnp.float32)
        two_pi_n = 2.0 * PI * n
        f_t = (jnp.arange(LOW_BOUND, HIGH_BOUND, dtype=jnp.float32) / 60.0) / FPS
        preds = (wave * hanning)[:, None, :]                 # (B, 1, T)
        ftt = f_t[None, :, None] * two_pi_n[None, None, :]   # (1, F, T)
        ca = (jnp.sum(preds * jnp.sin(ftt), -1) ** 2
              + jnp.sum(preds * jnp.cos(ftt), -1) ** 2)      # (B, F)
    hr = jnp.where(gt >= HIGH_BOUND, float(HIGH_BOUND - 1), gt)
    hr = jnp.where(hr <= LOW_BOUND, float(LOW_BOUND), hr)
    target = (hr - LOW_BOUND).astype(jnp.int32)
    logp = jax.nn.log_softmax(ca, axis=1)
    loss = -jnp.mean(logp[jnp.arange(B), target])
    idx = jnp.argmax(ca, axis=1).astype(jnp.int32) + LOW_BOUND
    return loss, idx


if __name__ == "__main__":
    CLIP_LENGTH = 128  # small clip length for the example (module default 256)
    BATCH = 2

    key = jax.random.PRNGKey(0)
    k_wave, k_gt = jax.random.split(key)
    wave = jax.random.normal(k_wave, (BATCH, CLIP_LENGTH), dtype=jnp.float32)
    gt = jax.random.uniform(k_gt, (BATCH,), minval=45.0, maxval=148.0,
                            dtype=jnp.float32)

    loss, max_idx = sp_loss(wave, gt, CLIP_LENGTH)
    jax.block_until_ready((loss, max_idx))

    # Exact-math check vs a pure-JAX reference that applies the SAME bf16
    # quantization as the kernel (same MXU path, f32 accumulation).
    bq_loss, bq_idx = _reference(wave, gt, CLIP_LENGTH, quantize_bf16=True)
    # Semantic check vs the full-f32 mirror of the PyTorch forward; tolerance
    # sized for the deliberate bf16 MXU inputs (per the perf review).
    f32_loss, f32_idx = _reference(wave, gt, CLIP_LENGTH, quantize_bf16=False)

    idx_ok = (max_idx == bq_idx) | (max_idx == f32_idx)
    assert bool(jnp.all(idx_ok)), (max_idx, bq_idx, f32_idx)
    assert bool(jnp.allclose(loss, bq_loss, rtol=5e-3, atol=5e-2)), (loss, bq_loss)
    assert bool(jnp.allclose(loss, f32_loss, rtol=5e-2, atol=1.0)), (loss, f32_loss)

    print("KERNEL_OK")
</pallas_src>

<mosaic_0001>
module attributes {stable_mosaic.version = 11 : i64} {
  func.func @sp_loss_kernel(%arg0: memref<2x128xbf16, #tpu.memory_space<vmem>>, %arg1: memref<128x256xbf16, #tpu.memory_space<vmem>>, %arg2: memref<2x1xf32, #tpu.memory_space<vmem>>, %arg3: memref<2x1xf32, #tpu.memory_space<vmem>>, %arg4: memref<2x1xi32, #tpu.memory_space<vmem>>) attributes {dimension_semantics = [], scalar_prefetch = 0 : i64, scratch_operands = 0 : i64, tpu.core_type = #tpu.core_type<tc>} {
    %c0 = arith.constant 0 : index
    %c0_0 = arith.constant 0 : index
    %0 = vector.load %arg0[%c0, %c0_0] : memref<2x128xbf16, #tpu.memory_space<vmem>>, vector<2x128xbf16>
    %c0_1 = arith.constant 0 : index
    %c0_2 = arith.constant 0 : index
    %1 = vector.load %arg1[%c0_1, %c0_2] : memref<128x256xbf16, #tpu.memory_space<vmem>>, vector<128x256xbf16>
    %cst = arith.constant dense<0.000000e+00> : vector<2x256xf32>
    %2 = tpu.matmul %0, %1, %cst {dimension_numbers = #tpu.dot_dimension_numbers<[1], [0], [0], [1], [0, 0, 1, 1], [], []>} : vector<2x128xbf16>, vector<128x256xbf16>, vector<2x256xf32> -> vector<2x256xf32>
    %3 = vector.extract_strided_slice %2 {offsets = [0, 0], sizes = [2, 128], strides = [1, 1]} : vector<2x256xf32> to vector<2x128xf32>
    %4 = vector.extract_strided_slice %2 {offsets = [0, 128], sizes = [2, 128], strides = [1, 1]} : vector<2x256xf32> to vector<2x128xf32>
    %5 = arith.mulf %3, %3 : vector<2x128xf32>
    %6 = arith.mulf %4, %4 : vector<2x128xf32>
    %7 = arith.addf %5, %6 : vector<2x128xf32>
    %8 = tpu.iota {dimensions = array<i32: 1>} : vector<2x128xi32>
    %c110_i32 = arith.constant 110 : i32
    %9 = vector.broadcast %c110_i32 : i32 to vector<2x128xi32>
    %10 = arith.cmpi slt, %8, %9 : vector<2x128xi32>
    %cst_3 = arith.constant 0xFF800000 : f32
    %11 = vector.broadcast %cst_3 : f32 to vector<2x128xf32>
    %12 = arith.select %10, %7, %11 : vector<2x128xi1>, vector<2x128xf32>
    %c0_4 = arith.constant 0 : index
    %c0_5 = arith.constant 0 : index
    %13 = vector.load %arg2[%c0_4, %c0_5] : memref<2x1xf32, #tpu.memory_space<vmem>>, vector<2x1xf32>
    %cst_6 = arith.constant 1.500000e+02 : f32
    %14 = vector.broadcast %cst_6 : f32 to vector<2x1xf32>
    %15 = arith.cmpf oge, %13, %14 : vector<2x1xf32>
    %cst_7 = arith.constant 1.490000e+02 : f32
    %16 = vector.broadcast %cst_7 : f32 to vector<2x1xf32>
    %17 = arith.select %15, %16, %13 : vector<2x1xi1>, vector<2x1xf32>
    %cst_8 = arith.constant 4.000000e+01 : f32
    %18 = vector.broadcast %cst_8 : f32 to vector<2x1xf32>
    %19 = arith.cmpf ole, %17, %18 : vector<2x1xf32>
    %cst_9 = arith.constant 4.000000e+01 : f32
    %20 = vector.broadcast %cst_9 : f32 to vector<2x1xf32>
    %21 = arith.select %19, %20, %17 : vector<2x1xi1>, vector<2x1xf32>
    %cst_10 = arith.constant 4.000000e+01 : f32
    %22 = vector.broadcast %cst_10 : f32 to vector<2x1xf32>
    %23 = arith.subf %21, %22 : vector<2x1xf32>
    %24 = arith.fptosi %23 : vector<2x1xf32> to vector<2x1xi32>
    %cst_11 = arith.constant dense<0xFF800000> : vector<2xf32>
    %25 = vector.multi_reduction <maximumf>, %12, %cst_11 [1] : vector<2x128xf32> to vector<2xf32>
    %26 = vector.shape_cast %25 : vector<2xf32> to vector<2x1xf32>
    %27 = vector.broadcast %26 : vector<2x1xf32> to vector<2x128xf32>
    %28 = arith.cmpf oeq, %12, %27 : vector<2x128xf32>
    %c128_i32 = arith.constant 128 : i32
    %29 = vector.broadcast %c128_i32 : i32 to vector<2x128xi32>
    %30 = arith.select %28, %8, %29 : vector<2x128xi1>, vector<2x128xi32>
    %cst_12 = arith.constant dense<2147483647> : vector<2xi32>
    %31 = vector.multi_reduction <minsi>, %30, %cst_12 [1] : vector<2x128xi32> to vector<2xi32>
    %32 = vector.shape_cast %31 : vector<2xi32> to vector<2x1xi32>
    %c40_i32 = arith.constant 40 : i32
    %33 = vector.broadcast %c40_i32 : i32 to vector<2x1xi32>
    %34 = arith.addi %32, %33 : vector<2x1xi32>
    %c0_13 = arith.constant 0 : index
    %c0_14 = arith.constant 0 : index
    %35 = vector.load %arg4[%c0_13, %c0_14] : memref<2x1xi32, #tpu.memory_space<vmem>>, vector<2x1xi32>
    tpu.vector_store %arg4[%c0_13, %c0_14], %34 {strides = array<i32>} : memref<2x1xi32, #tpu.memory_space<vmem>>, vector<2x1xi32>,
    %36 = vector.broadcast %26 : vector<2x1xf32> to vector<2x128xf32>
    %37 = arith.subf %12, %36 : vector<2x128xf32>
    %38 = math.exp %37 : vector<2x128xf32>
    %cst_15 = arith.constant dense<0.000000e+00> : vector<2xf32>
    %39 = vector.multi_reduction <add>, %38, %cst_15 [1] : vector<2x128xf32> to vector<2xf32>
    %40 = vector.shape_cast %39 : vector<2xf32> to vector<2x1xf32>
    %41 = math.log %40 : vector<2x1xf32>
    %42 = arith.addf %26, %41 : vector<2x1xf32>
    %43 = vector.broadcast %24 : vector<2x1xi32> to vector<2x128xi32>
    %44 = arith.cmpi eq, %8, %43 : vector<2x128xi32>
    %cst_16 = arith.constant 0.000000e+00 : f32
    %45 = vector.broadcast %cst_16 : f32 to vector<2x128xf32>
    %46 = arith.select %44, %7, %45 : vector<2x128xi1>, vector<2x128xf32>
    %cst_17 = arith.constant dense<0.000000e+00> : vector<2xf32>
    %47 = vector.multi_reduction <add>, %46, %cst_17 [1] : vector<2x128xf32> to vector<2xf32>
    %48 = vector.shape_cast %47 : vector<2xf32> to vector<2x1xf32>
    %49 = arith.subf %42, %48 : vector<2x1xf32>
    %c0_18 = arith.constant 0 : index
    %c0_19 = arith.constant 0 : index
    %50 = vector.load %arg3[%c0_18, %c0_19] : memref<2x1xf32, #tpu.memory_space<vmem>>, vector<2x1xf32>
    tpu.vector_store %arg3[%c0_18, %c0_19], %49 {strides = array<i32>} : memref<2x1xf32, #tpu.memory_space<vmem>>, vector<2x1xf32>,
    return
  }
}

</mosaic_0001>

<llo_original>
// kernel: _sp_loss_call.1
$region0: #{_sp_loss_call.1}
  #allocation0 [shape = 'u32[]', space=smem, size = 0x4, offset = 0x4, fixed_abs, tag = 'smem constant byte address 0x4 - core index']
  #allocation1 [shape = 'u32[144,128]{1,0:T(1,128)}', space=vmem, size = 0x12000, scoped, tag = 'internal scratch']
  %s0 = inlined_call_operand.vmem [shape: bf16[2,128], index: 0, kind: input, shape index: {}]
  %s1 = inlined_call_operand.hbm [shape: bf16[128,256], index: 1, kind: input, shape index: {}]
  %s2 = inlined_call_operand.vmem [shape: f32[2,1], index: 2, kind: input, shape index: {}]
  %s3 = inlined_call_operand.vmem [shape: f32[2,1], index: 3, kind: output, shape index: {0}]
  %s4 = inlined_call_operand.vmem [shape: s32[2,1], index: 4, kind: output, shape index: {1}]
  %5 = xla_tuple %s3, %s4
  %s6 = sld [smem:[#allocation0]]
  $region34: #{_sp_loss_call.1} parent=0
    _
  %s8 = ssub.s32 1, %s6
  %s9 = scalar_select 0, %s8, %s6
  $region1: #{_sp_loss_call.1} parent=0
    #allocation2 [shape = 'u8[65536]{0}', space=vmem, size = 0x10000, scoped, tag = 'input window, operand 1, single buffered']
    #allocation3 [shape = 's32[1]{0}', space=sflag, size = 0x4, scoped, tag = 'scoped memory for _sp_loss_call.1']
    %10 = vsyncpa [#allocation3], 0
    // Predicated region
    $region2: #{_sp_loss_call.1} parent=1 // pred_check
      _
    $region3: #{_sp_loss_call.1} parent=1 // pred_check_branch
      %12 = sbr.rel (0) target = $region5
    $region4: #{_sp_loss_call.1} parent=1 // pred_region
      _
    $region5: #{_sp_loss_call.1} parent=1 // pred_fallthru
      _
    // Predicated region
    $region6: #{_sp_loss_call.1} parent=1 // pred_check
      _
    $region7: #{_sp_loss_call.1} parent=1 // pred_check_branch
      %14 = sbr.rel (0) target = $region9
    $region8: #{_sp_loss_call.1} parent=1 // pred_region
      %s16 = ssub.s32 2048, 2048
      %17 = vsyncadd [#allocation3], %s16
      %s18 = sshll.u32 [#allocation2], 4
      %s19 = int_to_ptr.vmem [resolvable:$true] %s18
      %24 = dma.hbm_to_vmem [thread:$0]  %s1, 2048, %s19, [#allocation3], 128, 128, 8
    $region9: #{_sp_loss_call.1} parent=1 // pred_fallthru
      _
    // Predicated region
    $region10: #{_sp_loss_call.1} parent=1 // pred_check
      _
    $region11: #{_sp_loss_call.1} parent=1 // pred_check_branch
      %26 = sbr.rel (0) target = $region13
    $region12: #{_sp_loss_call.1} parent=1 // pred_region
      _
    $region13: #{_sp_loss_call.1} parent=1 // pred_fallthru
      _
    // Predicated region
    $region14: #{_sp_loss_call.1} parent=1 // pred_check
      _
    $region15: #{_sp_loss_call.1} parent=1 // pred_check_branch
      %28 = sbr.rel (0) target = $region17
    $region16: #{_sp_loss_call.1} parent=1 // pred_region
      %29 = dma.done [#allocation3], 2048
    $region17: #{_sp_loss_call.1} parent=1 // pred_fallthru
      _
    %v31 = vld [vmem:[%s0] sm:$0x1]
    %v32 = vld [vmem:[#allocation2] sm:$0xff]
    %v33 = vld [vmem:[#allocation2 + $0x8] sm:$0xff]
    %v34 = vld [vmem:[#allocation2 + $0x10] sm:$0xff]
    %v35 = vld [vmem:[#allocation2 + $0x18] sm:$0xff]
    %v36 = vld [vmem:[#allocation2 + $0x20] sm:$0xff]
    %v37 = vld [vmem:[#allocation2 + $0x28] sm:$0xff]
    %v38 = vld [vmem:[#allocation2 + $0x30] sm:$0xff]
    %v39 = vld [vmem:[#allocation2 + $0x38] sm:$0xff]
    %v40 = vld [vmem:[#allocation2 + $0x40] sm:$0xff]
    %v41 = vld [vmem:[#allocation2 + $0x48] sm:$0xff]
    %v42 = vld [vmem:[#allocation2 + $0x50] sm:$0xff]
    %v43 = vld [vmem:[#allocation2 + $0x58] sm:$0xff]
    %v44 = vld [vmem:[#allocation2 + $0x60] sm:$0xff]
    %v45 = vld [vmem:[#allocation2 + $0x68] sm:$0xff]
    %v46 = vld [vmem:[#allocation2 + $0x70] sm:$0xff]
    %v47 = vld [vmem:[#allocation2 + $0x78] sm:$0xff]
    %v64 = vunpack.c.l.b16 %v32
    %v65 = vunpack.c.h.b16 %v32
    %v66 = vunpack.c.l.b16 %v33
    %v67 = vunpack.c.h.b16 %v33
    %v68 = vunpack.c.l.b16 %v34
    %v69 = vunpack.c.h.b16 %v34
    %v70 = vunpack.c.l.b16 %v35
    %v71 = vunpack.c.h.b16 %v35
    %v72 = vunpack.c.l.b16 %v36
    %v73 = vunpack.c.h.b16 %v36
    %v74 = vunpack.c.l.b16 %v37
    %v75 = vunpack.c.h.b16 %v37
    %v76 = vunpack.c.l.b16 %v38
    %v77 = vunpack.c.h.b16 %v38
    %v78 = vunpack.c.l.b16 %v39
    %v79 = vunpack.c.h.b16 %v39
    %v80 = vunpack.c.l.b16 %v40
    %v81 = vunpack.c.h.b16 %v40
    %v82 = vunpack.c.l.b16 %v41
    %v83 = vunpack.c.h.b16 %v41
    %v84 = vunpack.c.l.b16 %v42
    %v85 = vunpack.c.h.b16 %v42
    %v86 = vunpack.c.l.b16 %v43
    %v87 = vunpack.c.h.b16 %v43
    %v88 = vunpack.c.l.b16 %v44
    %v89 = vunpack.c.h.b16 %v44
    %v90 = vunpack.c.l.b16 %v45
    %v91 = vunpack.c.h.b16 %v45
    %v92 = vunpack.c.l.b16 %v46
    %v93 = vunpack.c.h.b16 %v46
    %v94 = vunpack.c.l.b16 %v47
    %v95 = vunpack.c.h.b16 %v47
    %v96 = vpack.c.b16 %v66, %v64
    %v97 = vpack.c.b16 %v67, %v65
    %v98 = vpack.c.b16 %v70, %v68
    %v99 = vpack.c.b16 %v71, %v69
    %v100 = vpack.c.b16 %v74, %v72
    %v101 = vpack.c.b16 %v75, %v73
    %v102 = vpack.c.b16 %v78, %v76
    %v103 = vpack.c.b16 %v79, %v77
    %v104 = vpack.c.b16 %v82, %v80
    %v105 = vpack.c.b16 %v83, %v81
    %v106 = vpack.c.b16 %v86, %v84
    %v107 = vpack.c.b16 %v87, %v85
    %v108 = vpack.c.b16 %v90, %v88
    %v109 = vpack.c.b16 %v91, %v89
    %v110 = vpack.c.b16 %v94, %v92
    %v111 = vpack.c.b16 %v95, %v93
    %128 = vmatprep.subr.bf16.mxu0 %v111
    %129 = vmatpush1.bf16.msra.mxu0 %v110
    %130 = vmatprep.subr.bf16.mxu0 %v109
    %131 = vmatpush1.bf16.msra.mxu0 %v108
    %132 = vmatprep.subr.bf16.mxu0 %v107
    %133 = vmatpush1.bf16.msra.mxu0 %v106
    %134 = vmatprep.subr.bf16.mxu0 %v105
    %135 = vmatpush1.bf16.msra.mxu0 %v104
    %136 = vmatprep.subr.bf16.mxu0 %v103
    %137 = vmatpush1.bf16.msra.mxu0 %v102
    %138 = vmatprep.subr.bf16.mxu0 %v101
    %139 = vmatpush1.bf16.msra.mxu0 %v100
    %140 = vmatprep.subr.bf16.mxu0 %v99
    %141 = vmatpush1.bf16.msra.mxu0 %v98
    %142 = vmatprep.subr.bf16.mxu0 %v97
    %143 = vmatpush1.bf16.msra.mxu0 %v96
    %144 = vmatprep.subr.bf16.mxu0 0
    %145 = vmatpush2.bf16.msra.mxu0 0
    %146 = vmatprep.subr.bf16.mxu0 0
    %147 = vmatpush2.bf16.msra.mxu0 0
    %148 = vmatprep.subr.bf16.mxu0 0
    %149 = vmatpush2.bf16.msra.mxu0 0
    %150 = vmatprep.subr.bf16.mxu0 0
    %151 = vmatpush2.bf16.msra.mxu0 0
    %152 = vmatprep.subr.bf16.mxu0 0
    %153 = vmatpush2.bf16.msra.mxu0 0
    %154 = vmatprep.subr.bf16.mxu0 0
    %155 = vmatpush2.bf16.msra.mxu0 0
    %156 = vmatprep.subr.bf16.mxu0 0
    %157 = vmatpush2.bf16.msra.mxu0 0
    %158 = vmatprep.subr.bf16.mxu0 0
    %159 = vmatpush2.bf16.msra.mxu0 0
    %160 = vmatprep.mubr.bf16.mxu0 0
    %161 = vmatmul.mubr.bf16.gmra.mxu0 %v31
    %v162 = vpop.f32.mrf.mxu0
    %v163 = vadd.f32 0.0, %v162
    %v164 = vpop.f32.mrf.mxu0
    %v165 = vadd.f32 0.0, %v164
    %v166 = vpop.f32.mrf.mxu0
    %v167 = vpop.f32.mrf.mxu0
    %168 = vdwg.mxu0
    %v169 = vmul.f32 %v163, %v163
    %v170 = vmul.f32 %v165, %v165
    %v171 = vadd.f32 %v169, %v170
    %v172 = vlaneseq
    %v173 = vand.u32 %v172, 127
    %vm174 = vcmp.lt.s32.totalorder %v173, 110
    %v175 = vsel %vm174, %v171, -inf
    %v176 = vld [vmem:[%s2] sm:$0x3]
    %vm177 = vcmp.ge.f32.partialorder %v176, 150.0
    %v178 = vsel %vm177, 149.0, %v176
    %vm179 = vcmp.le.f32.partialorder %v178, 40.0
    %v180 = vsel %vm179, 40.0, %v178
    %v181 = vsub.f32 %v180, 40.0
    %v182 = vcvt.f32.s32.to.zero.pseudo %v181
    %vm183 = vcmask 1041408
    %v184 = vsel %vm183, %v175, -inf
    %185 = vmax.xlane.f32.xlu0 %v184
    %v186 = vpop.xlane.xlu0 %185
    %vm187 = vcmp.eq.f32.partialorder %v175, %v186
    %v188 = vsel %vm187, %v173, 128
    %v189 = vsel %vm183, %v188, 2147483647
    %v190 = vand.u32 %v189, 65535
    %v191 = vshra.s32 %v189, 16
    %v192 = vcvt.s32.f32 %v190
    %v193 = vcvt.s32.f32 %v191
    %194 = vmin.xlane.f32.xlu0 %v193
    %v195 = vpop.xlane.xlu0 %194
    %vm196 = vcmp.eq.f32.partialorder %v193, %v195
    %v197 = vsel %vm196, %v192, inf
    %198 = vmin.xlane.f32.xlu0 %v197
    %v199 = vpop.xlane.xlu0 %198
    %v200 = vcvt.f32.s32 %v199
    %v201 = vcvt.f32.s32 %v195
    %v202 = vshll.u32 %v201, 16
    %v203 = vadd.s32 %v202, %v200
    %v204 = vadd.s32 %v203, 40
    %vm205 = vcmask 1024
    %206 = vst.msk [vmem:[%s4] sm:$0x3] %vm205, %v204
    %v207 = vsub.f32 %v175, %v186
    %v208 = vmul.f32 %v207, 1.442695
    %v209 = vpow.pop %v208
    %v210 = vsel %vm183, %v209, 0.0
    %211 = vadd.xlane.f32.xlu0 %v210
    %v212 = vpop.xlane.xlu0 %211
    %v213 = vlog2.pop %v212
    %v214 = vmul.f32 %v213, 0.6931472
    %v215 = vadd.f32 %v186, %v214
    %216 = vset.pattern.permute.xlu0 0
    %217 = vperm.xlu0 %216, %v182
    %v218 = vpop.permute.xlu0 %217
    %vm219 = vcmp.eq.s32.totalorder %v173, %v218
    %v220 = vsel %vm219, %v171, 0.0
    %v221 = vsel %vm183, %v220, 0.0
    %222 = vadd.xlane.f32.xlu0 %v221
    %v223 = vpop.xlane.xlu0 %222
    %v224 = vsub.f32 %v215, %v223
    %225 = vst.msk [vmem:[%s3] sm:$0x3] %vm205, %v224
    // Predicated region
    $region18: #{_sp_loss_call.1} parent=1 // pred_check
      _
    $region19: #{_sp_loss_call.1} parent=1 // pred_check_branch
      %227 = sbr.rel (0) target = $region21
    $region20: #{_sp_loss_call.1} parent=1 // pred_region
      _
    $region21: #{_sp_loss_call.1} parent=1 // pred_fallthru
      _
    // Predicated region
    $region22: #{_sp_loss_call.1} parent=1 // pred_check
      _
    $region23: #{_sp_loss_call.1} parent=1 // pred_check_branch
      %229 = sbr.rel (0) target = $region25
    $region24: #{_sp_loss_call.1} parent=1 // pred_region
      _
    $region25: #{_sp_loss_call.1} parent=1 // pred_fallthru
      _
    // Predicated region
    $region26: #{_sp_loss_call.1} parent=1 // pred_check
      _
    $region27: #{_sp_loss_call.1} parent=1 // pred_check_branch
      %231 = sbr.rel (0) target = $region29
    $region28: #{_sp_loss_call.1} parent=1 // pred_region
      _
    $region29: #{_sp_loss_call.1} parent=1 // pred_fallthru
      _
    // Predicated region
    $region30: #{_sp_loss_call.1} parent=1 // pred_check
      _
    $region31: #{_sp_loss_call.1} parent=1 // pred_check_branch
      %233 = sbr.rel (0) target = $region33
    $region32: #{_sp_loss_call.1} parent=1 // pred_region
      _
    $region33: #{_sp_loss_call.1} parent=1 // pred_fallthru
      _
    %234 = vsyncpa [#allocation3], 1

</llo_original>
